<compile_context>
chip_gen: v5e
topology: v5e:2x2
jax: 0.10.0
libtpu: 0.0.40
codegen_flags: <defaults>
</compile_context>

<pallas_src>
import jax
import jax.numpy as jnp
from jax.experimental import pallas as pl
from jax.experimental.pallas import tpu as pltpu


def _focal_modulation(ce, gamma):
    """(1 - exp(-ce))**gamma, specialized for small integer gamma."""
    base = 1.0 - jnp.exp(-ce)
    g = float(gamma)
    if g == 0.0:
        return jnp.ones_like(ce)
    if g.is_integer() and 1.0 <= g <= 8.0:
        # Integer power -> repeated multiply: avoids exp(g*log(x)) on the
        # single-port EUP and sidesteps NaN when `base` rounds slightly < 0.
        p = base
        for _ in range(int(g) - 1):
            p = p * base
        return p
    # Non-integer gamma: clamp so pow never sees a (rounding-induced) negative.
    return jnp.maximum(base, 0.0) ** g


def _make_kernel(*, gamma, reduction, has_alpha, n_total, tile_n):
    """Build a kernel specialized on (gamma, reduction, has_alpha, sizes)."""

    def kernel(*refs):
        if has_alpha:
            logits_ref, tgt_ref, alpha_ref, out_ref = refs
        else:
            logits_ref, tgt_ref, out_ref = refs
            alpha_ref = None

        # Stream the tile in its native dtype; compute in f32 (v5e has no
        # bf16 VPU/EUP, and f32 keeps the log/exp numerics sound).
        logits = logits_ref[...].astype(jnp.float32)        # (tile_n, C)
        tgt = tgt_ref[...]                                   # (tile_n, 1) int32

        # --- numerically stable cross entropy, reduction='none' ---
        m = jnp.max(logits, axis=-1, keepdims=True)                   # (tile,1)
        shifted = logits - m
        sumexp = jnp.sum(jnp.exp(shifted), axis=-1, keepdims=True)    # (tile,1)

        col = jax.lax.broadcasted_iota(jnp.int32, logits.shape, 1)    # (tile,C)
        onehot = col == tgt                                            # (tile,C)
        # Gather the *shifted* target logit; ce = log(sum exp(shifted)) - shifted[tgt]
        shifted_tgt = jnp.sum(jnp.where(onehot, shifted, 0.0),
                              axis=-1, keepdims=True)                  # (tile,1)
        ce = jnp.log(sumexp) - shifted_tgt                             # (tile,1)

        # --- focal modulation ---
        focal = _focal_modulation(ce, gamma) * ce                      # (tile,1)

        # --- optional alpha weighting (reuse the same one-hot mask) ---
        if has_alpha:
            alpha = alpha_ref[...].astype(jnp.float32)                 # (1, C)
            alpha_t = jnp.sum(jnp.where(onehot, alpha, 0.0),
                              axis=-1, keepdims=True)                  # (tile,1)
            focal = alpha_t * focal

        if reduction in ("mean", "sum"):
            i = pl.program_id(0)

            # Mask rows of the (possibly partial) last tile so garbage rows
            # never contaminate the running sum.
            row = i * tile_n + jax.lax.broadcasted_iota(
                jnp.int32, (tile_n, 1), 0)
            focal = jnp.where(row < n_total, focal, 0.0)
            partial = jnp.sum(focal, keepdims=True)                    # (1, 1)

            # Accumulator pattern: the (1,1) output block is resident across
            # the whole (reduction) grid axis.
            @pl.when(i == 0)
            def _init():
                out_ref[...] = jnp.zeros_like(out_ref)

            out_ref[...] += partial

            if reduction == "mean":
                @pl.when(i == pl.num_programs(0) - 1)
                def _finalize():
                    out_ref[...] = out_ref[...] * jnp.float32(1.0 / n_total)
        else:  # 'none'
            out_ref[...] = focal

    return kernel


def _choose_tile_n(n, c, itemsize):
    """Pick a row-tile so a double-buffered logits block fits all chips.

    Target ~6 MiB per logits block (2 buffers ~= 12 MiB) -> comfortably inside
    v7x's 64-MiB physical / 32-MiB scoped VMEM, while still >= hundreds of rows
    for realistic C so the ~0.35 us/step grid overhead is amortized.
    """
    target_block_bytes = 6 * 1024 * 1024
    tile = target_block_bytes // max(1, c * itemsize)
    tile = min(tile, 1024)
    tile = max(tile, 8)
    tile = (tile // 8) * 8          # sublane multiple
    if tile >= n:
        return n                    # single full block (full-dim rule)
    return tile


def focal_loss(logits, targets, alpha=None, gamma=2.0, reduction="mean",
               tile_n=None):
    """Pallas TPU implementation of FocalLoss.forward.

    logits:  (N, C) float array (f32 or bf16 -- streamed in its native dtype)
    targets: (N,)   int array of class indices
    alpha:   optional (C,) per-class weights
    """
    n, c = logits.shape
    tgt2d = targets.astype(jnp.int32).reshape(n, 1)
    has_alpha = alpha is not None

    itemsize = jnp.dtype(logits.dtype).itemsize
    if tile_n is None:
        tile_n = _choose_tile_n(n, c, itemsize)
    else:
        tile_n = int(tile_n)
        if tile_n >= n:
            tile_n = n
        else:
            tile_n = max(8, (tile_n // 8) * 8)
    num_tiles = pl.cdiv(n, tile_n)

    kernel = _make_kernel(gamma=float(gamma), reduction=reduction,
                          has_alpha=has_alpha, n_total=n, tile_n=tile_n)

    in_specs = [
        pl.BlockSpec((tile_n, c), lambda i: (i, 0)),   # logits tile (streamed)
        pl.BlockSpec((tile_n, 1), lambda i: (i, 0)),   # target tile
    ]
    args = [logits, tgt2d]
    if has_alpha:
        # Full (1, C) alpha block, constant index -> fetched once, stays resident.
        in_specs.append(pl.BlockSpec((1, c), lambda i: (0, 0)))
        args.append(jnp.asarray(alpha, jnp.float32).reshape(1, c))

    if reduction in ("mean", "sum"):
        out_shape = jax.ShapeDtypeStruct((1, 1), jnp.float32)
        out_spec = pl.BlockSpec((1, 1), lambda i: (0, 0))  # resident accumulator
        dim_sem = ("arbitrary",)     # reduction carried across the grid axis
    else:
        out_shape = jax.ShapeDtypeStruct((n, 1), jnp.float32)
        out_spec = pl.BlockSpec((tile_n, 1), lambda i: (i, 0))
        dim_sem = ("parallel",)      # independent tiles (v7x: 2 TensorCores)

    # Explicit VMEM budget: double-buffered inputs + output + headroom.
    per_step_bytes = (tile_n * c * itemsize          # logits block
                      + tile_n * 4                   # targets block
                      + tile_n * 4                   # output block
                      + (c * 4 if has_alpha else 0)) # alpha block
    vmem_limit = int(min(max(2 * per_step_bytes + (8 << 20), 16 << 20), 64 << 20))

    out = pl.pallas_call(
        kernel,
        out_shape=out_shape,
        grid_spec=pltpu.PrefetchScalarGridSpec(
            num_scalar_prefetch=0,
            grid=(num_tiles,),
            in_specs=in_specs,
            out_specs=out_spec,
        ),
        compiler_params=pltpu.CompilerParams(
            dimension_semantics=dim_sem,
            vmem_limit_bytes=vmem_limit,
        ),
    )(*args)

    if reduction in ("mean", "sum"):
        return out[0, 0]
    return out[:, 0]


def _focal_loss_ref(logits, targets, alpha=None, gamma=2.0, reduction="mean"):
    """Pure-JAX reference mirroring the PyTorch module."""
    logits = logits.astype(jnp.float32)
    lse = jax.nn.logsumexp(logits, axis=-1)
    tgt_logit = jnp.take_along_axis(logits, targets[:, None], axis=-1)[:, 0]
    ce = lse - tgt_logit
    focal = (1.0 - jnp.exp(-ce)) ** gamma * ce
    if alpha is not None:
        focal = alpha[targets] * focal
    if reduction == "mean":
        return focal.mean()
    if reduction == "sum":
        return focal.sum()
    return focal


if __name__ == "__main__":
    key = jax.random.PRNGKey(0)
    k1, k2 = jax.random.split(key)

    N, C = 20, 16                     # small; N=20 with tile_n=8 -> partial last tile
    logits = jax.random.normal(k1, (N, C), dtype=jnp.float32)
    targets = jax.random.randint(k2, (N,), 0, C, dtype=jnp.int32)
    alpha = jnp.linspace(0.25, 1.0, C, dtype=jnp.float32)

    # 1) Default config (alpha=None, gamma=2.0, 'mean'); tile_n=8 exercises the
    #    multi-tile accumulator path including a masked partial last tile.
    out = jax.block_until_ready(focal_loss(logits, targets, tile_n=8))
    ref = _focal_loss_ref(logits, targets)
    assert jnp.allclose(out, ref, rtol=1e-5, atol=1e-5), (out, ref)

    # 2) alpha + 'sum'
    out = jax.block_until_ready(
        focal_loss(logits, targets, alpha=alpha, reduction="sum", tile_n=8))
    ref = _focal_loss_ref(logits, targets, alpha=alpha, reduction="sum")
    assert jnp.allclose(out, ref, rtol=1e-5, atol=1e-5), (out, ref)

    # 3) alpha + 'none' (per-sample losses), integer gamma=3
    out = jax.block_until_ready(
        focal_loss(logits, targets, alpha=alpha, gamma=3.0,
                   reduction="none", tile_n=8))
    ref = _focal_loss_ref(logits, targets, alpha=alpha, gamma=3.0,
                          reduction="none")
    assert jnp.allclose(out, ref, rtol=1e-5, atol=1e-5)

    # 4) bf16 logits streamed as bf16 (halves HBM traffic); f32 math in-kernel.
    logits_bf16 = logits.astype(jnp.bfloat16)
    out = jax.block_until_ready(focal_loss(logits_bf16, targets, tile_n=8))
    ref = _focal_loss_ref(logits_bf16, targets)
    assert jnp.allclose(out, ref, rtol=1e-3, atol=1e-3), (out, ref)

    # 5) Automatic tile selection (single full block at this toy size).
    out = jax.block_until_ready(focal_loss(logits, targets))
    assert jnp.allclose(out, _focal_loss_ref(logits, targets),
                        rtol=1e-5, atol=1e-5)

    print("KERNEL_OK")
</pallas_src>

<mosaic_0001>
module attributes {stable_mosaic.version = 11 : i64} {
  func.func @kernel(%arg0: i32, %arg1: memref<8x16xf32, #tpu.memory_space<vmem>>, %arg2: memref<8x1xi32, #tpu.memory_space<vmem>>, %arg3: memref<1x1xf32, #tpu.memory_space<vmem>>) attributes {dimension_semantics = [#tpu.dimension_semantics<arbitrary>], iteration_bounds = array<i64: 3>, scalar_prefetch = 0 : i64, scratch_operands = 0 : i64, tpu.core_type = #tpu.core_type<tc>, window_params = [{transform_indices = @transform_0, window_bounds = array<i64: 8, 16>}, {transform_indices = @transform_1, window_bounds = array<i64: 8, 1>}, {pipeline_mode = #tpu.pipeline_mode<synchronous>, transform_indices = @transform_2, window_bounds = array<i64: 1, 1>}]} {
    %c0 = arith.constant 0 : index
    %c0_0 = arith.constant 0 : index
    %0 = vector.load %arg1[%c0, %c0_0] : memref<8x16xf32, #tpu.memory_space<vmem>>, vector<8x16xf32>
    %c0_1 = arith.constant 0 : index
    %c0_2 = arith.constant 0 : index
    %1 = vector.load %arg2[%c0_1, %c0_2] : memref<8x1xi32, #tpu.memory_space<vmem>>, vector<8x1xi32>
    %cst = arith.constant dense<0xFF800000> : vector<8xf32>
    %2 = vector.multi_reduction <maximumf>, %0, %cst [1] : vector<8x16xf32> to vector<8xf32>
    %3 = vector.shape_cast %2 : vector<8xf32> to vector<8x1xf32>
    %4 = vector.broadcast %3 : vector<8x1xf32> to vector<8x16xf32>
    %5 = arith.subf %0, %4 : vector<8x16xf32>
    %6 = math.exp %5 : vector<8x16xf32>
    %cst_3 = arith.constant dense<0.000000e+00> : vector<8xf32>
    %7 = vector.multi_reduction <add>, %6, %cst_3 [1] : vector<8x16xf32> to vector<8xf32>
    %8 = vector.shape_cast %7 : vector<8xf32> to vector<8x1xf32>
    %9 = tpu.iota {dimensions = array<i32: 1>} : vector<8x16xi32>
    %10 = vector.broadcast %1 : vector<8x1xi32> to vector<8x16xi32>
    %11 = arith.cmpi eq, %9, %10 : vector<8x16xi32>
    %cst_4 = arith.constant 0.000000e+00 : f32
    %12 = vector.broadcast %cst_4 : f32 to vector<8x16xf32>
    %13 = arith.select %11, %5, %12 : vector<8x16xi1>, vector<8x16xf32>
    %cst_5 = arith.constant dense<0.000000e+00> : vector<8xf32>
    %14 = vector.multi_reduction <add>, %13, %cst_5 [1] : vector<8x16xf32> to vector<8xf32>
    %15 = vector.shape_cast %14 : vector<8xf32> to vector<8x1xf32>
    %16 = math.log %8 : vector<8x1xf32>
    %17 = arith.subf %16, %15 : vector<8x1xf32>
    %cst_6 = arith.constant 0.000000e+00 : f32
    %18 = vector.broadcast %cst_6 : f32 to vector<8x1xf32>
    %19 = arith.subf %18, %17 : vector<8x1xf32>
    %20 = math.exp %19 : vector<8x1xf32>
    %cst_7 = arith.constant 1.000000e+00 : f32
    %21 = vector.broadcast %cst_7 : f32 to vector<8x1xf32>
    %22 = arith.subf %21, %20 : vector<8x1xf32>
    %23 = arith.mulf %22, %22 : vector<8x1xf32>
    %24 = arith.mulf %23, %17 : vector<8x1xf32>
    %c8_i32 = arith.constant 8 : i32
    %25 = arith.muli %arg0, %c8_i32 : i32
    %26 = tpu.iota {dimensions = array<i32: 0>} : vector<8x1xi32>
    %27 = vector.broadcast %25 : i32 to vector<8x1xi32>
    %28 = arith.addi %27, %26 : vector<8x1xi32>
    %c20_i32 = arith.constant 20 : i32
    %29 = vector.broadcast %c20_i32 : i32 to vector<8x1xi32>
    %30 = arith.cmpi slt, %28, %29 : vector<8x1xi32>
    %cst_8 = arith.constant 0.000000e+00 : f32
    %31 = vector.broadcast %cst_8 : f32 to vector<8x1xf32>
    %32 = arith.select %30, %24, %31 : vector<8x1xi1>, vector<8x1xf32>
    %33 = vector.shape_cast %32 : vector<8x1xf32> to vector<1x8x1xf32>
    %cst_9 = arith.constant dense<0.000000e+00> : vector<1xf32>
    %34 = vector.multi_reduction <add>, %33, %cst_9 [1, 2] : vector<1x8x1xf32> to vector<1xf32>
    %35 = vector.shape_cast %34 : vector<1xf32> to vector<1x1x1xf32>
    %36 = vector.extract %35[0, 0, 0] : f32 from vector<1x1x1xf32>
    %37 = vector.broadcast %36 : f32 to vector<1x1xf32>
    %c0_i32 = arith.constant 0 : i32
    %38 = arith.cmpi eq, %arg0, %c0_i32 : i32
    %39 = arith.extui %38 : i1 to i32
    %c0_i32_10 = arith.constant 0 : i32
    %40 = arith.cmpi ne, %39, %c0_i32_10 : i32
    scf.if %40 {
      %cst_16 = arith.constant 0.000000e+00 : f32
      %47 = vector.broadcast %cst_16 : f32 to vector<1x1xf32>
      %c0_17 = arith.constant 0 : index
      %c0_18 = arith.constant 0 : index
      %48 = vector.load %arg3[%c0_17, %c0_18] : memref<1x1xf32, #tpu.memory_space<vmem>>, vector<1x1xf32>
      tpu.vector_store %arg3[%c0_17, %c0_18], %47 {strides = array<i32>} : memref<1x1xf32, #tpu.memory_space<vmem>>, vector<1x1xf32>,
    } else {
    }
    %c0_11 = arith.constant 0 : index
    %c0_12 = arith.constant 0 : index
    %41 = vector.load %arg3[%c0_11, %c0_12] : memref<1x1xf32, #tpu.memory_space<vmem>>, vector<1x1xf32>
    %42 = arith.addf %41, %37 : vector<1x1xf32>
    %c0_13 = arith.constant 0 : index
    %c0_14 = arith.constant 0 : index
    %43 = vector.load %arg3[%c0_13, %c0_14] : memref<1x1xf32, #tpu.memory_space<vmem>>, vector<1x1xf32>
    tpu.vector_store %arg3[%c0_13, %c0_14], %42 {strides = array<i32>} : memref<1x1xf32, #tpu.memory_space<vmem>>, vector<1x1xf32>,
    %c2_i32 = arith.constant 2 : i32
    %44 = arith.cmpi eq, %arg0, %c2_i32 : i32
    %45 = arith.extui %44 : i1 to i32
    %c0_i32_15 = arith.constant 0 : i32
    %46 = arith.cmpi ne, %45, %c0_i32_15 : i32
    scf.if %46 {
      %c0_16 = arith.constant 0 : index
      %c0_17 = arith.constant 0 : index
      %47 = vector.load %arg3[%c0_16, %c0_17] : memref<1x1xf32, #tpu.memory_space<vmem>>, vector<1x1xf32>
      %cst_18 = arith.constant 5.000000e-02 : f32
      %48 = vector.broadcast %cst_18 : f32 to vector<1x1xf32>
      %49 = arith.mulf %47, %48 : vector<1x1xf32>
      %c0_19 = arith.constant 0 : index
      %c0_20 = arith.constant 0 : index
      %50 = vector.load %arg3[%c0_19, %c0_20] : memref<1x1xf32, #tpu.memory_space<vmem>>, vector<1x1xf32>
      tpu.vector_store %arg3[%c0_19, %c0_20], %49 {strides = array<i32>} : memref<1x1xf32, #tpu.memory_space<vmem>>, vector<1x1xf32>,
    } else {
    }
    return
  }
  func.func @transform_0(%arg0: i32) -> (i32, i32) {
    %c0_i32 = arith.constant 0 : i32
    %c0_i32_0 = arith.constant 0 : i32
    return %arg0, %c0_i32 : i32, i32
  }
  func.func @transform_1(%arg0: i32) -> (i32, i32) {
    %c0_i32 = arith.constant 0 : i32
    %c0_i32_0 = arith.constant 0 : i32
    return %arg0, %c0_i32 : i32, i32
  }
  func.func @transform_2(%arg0: i32) -> (i32, i32) {
    %c0_i32 = arith.constant 0 : i32
    %c0_i32_0 = arith.constant 0 : i32
    %c0_i32_1 = arith.constant 0 : i32
    return %c0_i32, %c0_i32_0 : i32, i32
  }
}

</mosaic_0001>

<llo_original>
// kernel: tpu_custom_call.1
$region0: #{tpu_custom_call.1}
  #allocation0 [shape = 'u32[]', space=smem, size = 0x4, offset = 0x4, fixed_abs, tag = 'smem constant byte address 0x4 - core index']
  #allocation1 [shape = 'u32[72,128]{1,0:T(1,128)}', space=vmem, size = 0x9000, scoped, tag = 'internal scratch']
  %s0 = inlined_call_operand.vmem [shape: f32[20,16], index: 0, kind: input, shape index: {}]
  %s1 = inlined_call_operand.vmem [shape: s32[20,1], index: 1, kind: input, shape index: {}]
  %s2 = inlined_call_operand.hbm [shape: f32[1,1], index: 2, kind: output, shape index: {}]
  %s3 = sld [smem:[#allocation0]]
  $region49: #{tpu_custom_call.1} parent=0
    _
  %s5 = ssub.s32 1, %s3
  %s6 = scalar_select 0, %s5, %s3
  $region1: #{tpu_custom_call.1} parent=0
    #allocation2 [shape = 'u8[512]{0}', space=vmem, size = 0x400, scoped, tag = 'output window, operand 0, single buffered']
    #allocation3 [shape = 's32[2]{0}', space=sflag, size = 0x8, scoped, tag = 'scoped memory for tpu_custom_call.1']
    %7 = vsyncpa [#allocation3], 0
    loop: start=0, step=1, limit=5
    $region2: #{tpu_custom_call.1} parent=1 // loop_pre_header
      _
    $region3: #{tpu_custom_call.1} parent=1 // loop_header
      %s9 = sphi 0, %s13
      %p10 = scmp.ge.s32.totalorder %s9, 5
      %s19 = sphi 0, %s21
      %s22 = sphi 0, %s19
      %s23 = sphi 0, %s22
      %s39 = sphi 0, %s23
      %s45 = sphi 0, %s47
      %s48 = sphi 0, %s45
      %s49 = sphi 0, %s48
      %s65 = sphi 0, %s49
      %s69 = sphi 0, %s69
      %s71 = sphi 0, %s69
      %s72 = sphi 0, %s71
      %s86 = sphi 0, %s72
    $region4: #{tpu_custom_call.1} parent=1 // loop_header_branch
      %12 = sbr.rel (%p10) target = $region8
    $region5: #{tpu_custom_call.1} parent=1 // loop_body
      %s14 = ssub.s32 %s9, 1
      %s15 = ssub.s32 %s9, 2
      %s16 = sadd.s32 %s9, 1
      %s17 = ssub.s32 %s9, %s16
      %p18 = scmp.eq.s32.totalorder %s17, 0
      %s20 = sadd.s32 %s19, 1
      %s21 = scalar_select %p18, %s19, %s20
      %p24 = pneg %p18
      %p25 = scmp.eq.s32.totalorder %s9, 2
      %p26 = por %p24, %p25
      %p27 = scmp.ne.s32.totalorder %s19, %s22
      %p28 = scmp.eq.s32.totalorder %s9, 0
      %p29 = por %p27, %p28
      %p30 = scmp.ne.s32.totalorder %s19, %s22
      %p31 = scmp.eq.s32.totalorder %s14, 2
      %p32 = por %p30, %p31
      %p33 = scmp.ne.s32.totalorder %s22, %s23
      %p34 = scmp.eq.s32.totalorder %s14, 0
      %p35 = por %p33, %p34
      %p36 = scmp.ne.s32.totalorder %s22, %s23
      %p37 = scmp.eq.s32.totalorder %s15, 2
      %p38 = por %p36, %p37
      %p40 = scmp.ne.s32.totalorder %s23, %s39
      %p41 = scmp.eq.s32.totalorder %s15, 0
      %p42 = por %p40, %p41
      %s43 = ssub.s32 %s9, %s16
      %p44 = scmp.eq.s32.totalorder %s43, 0
      %s46 = sadd.s32 %s45, 1
      %s47 = scalar_select %p44, %s45, %s46
      %p50 = pneg %p44
      %p51 = scmp.eq.s32.totalorder %s9, 2
      %p52 = por %p50, %p51
      %p53 = scmp.ne.s32.totalorder %s45, %s48
      %p54 = scmp.eq.s32.totalorder %s9, 0
      %p55 = por %p53, %p54
      %p56 = scmp.ne.s32.totalorder %s45, %s48
      %p57 = scmp.eq.s32.totalorder %s14, 2
      %p58 = por %p56, %p57
      %p59 = scmp.ne.s32.totalorder %s48, %s49
      %p60 = scmp.eq.s32.totalorder %s14, 0
      %p61 = por %p59, %p60
      %p62 = scmp.ne.s32.totalorder %s48, %s49
      %p63 = scmp.eq.s32.totalorder %s15, 2
      %p64 = por %p62, %p63
      %p66 = scmp.ne.s32.totalorder %s49, %s65
      %p67 = scmp.eq.s32.totalorder %s15, 0
      %p68 = por %p66, %p67
      %s70 = sadd.s32 %s69, 1
      %p73 = scmp.eq.s32.totalorder %s9, 2
      %p74 = scmp.ne.s32.totalorder %s69, %s71
      %p75 = scmp.eq.s32.totalorder %s9, 0
      %p76 = por %p74, %p75
      %p77 = scmp.ne.s32.totalorder %s69, %s71
      %p78 = scmp.eq.s32.totalorder %s14, 2
      %p79 = por %p77, %p78
      %p80 = scmp.ne.s32.totalorder %s71, %s72
      %p81 = scmp.eq.s32.totalorder %s14, 0
      %p82 = por %p80, %p81
      %p83 = scmp.ne.s32.totalorder %s71, %s72
      %p84 = scmp.eq.s32.totalorder %s15, 2
      %p85 = por %p83, %p84
      %p87 = scmp.ne.s32.totalorder %s72, %s86
      %p88 = scmp.eq.s32.totalorder %s15, 0
      %p89 = por %p87, %p88
      %p90 = scmp.le.s32.totalorder 1, %s9
      %p91 = scmp.lt.s32.totalorder %s9, 4
      %p92 = pnand %p90, %p91
      %p93 = pneg %p92
      // Predicated region
      $region9: #{tpu_custom_call.1} parent=5 // pred_check
        _
      $region10: #{tpu_custom_call.1} parent=5 // pred_check_branch
        %95 = sbr.rel (%p92) target = $region12
      $region11: #{tpu_custom_call.1} parent=5 // pred_region
        %s96 = ssub.s32 %s9, 1
      $region12: #{tpu_custom_call.1} parent=5 // pred_fallthru
        _
      %p97 = scmp.lt.s32.totalorder %s9, 3
      // Predicated region
      $region13: #{tpu_custom_call.1} parent=5 // pred_check
        %p98 = pneg %p97
      $region14: #{tpu_custom_call.1} parent=5 // pred_check_branch
        %100 = sbr.rel (%p98) target = $region16
      $region15: #{tpu_custom_call.1} parent=5 // pred_region
        // Predicated region
        $region17: #{tpu_custom_call.1} parent=15 // pred_check
          %p101 = pneg %p29
        $region18: #{tpu_custom_call.1} parent=15 // pred_check_branch
          %103 = sbr.rel (%p101) target = $region20
        $region19: #{tpu_custom_call.1} parent=15 // pred_region
          %p104 = scmp.lt.s32.totalorder %s9, 2
          %s105 = scalar_select %p104, %s9, 2
          %s106 = smul.addr %s105, 8
          %s107 = scalar_lea.vmem %s0, %s106
        $region20: #{tpu_custom_call.1} parent=15 // pred_fallthru
          _
        // Predicated region
        $region21: #{tpu_custom_call.1} parent=15 // pred_check
          %p108 = pneg %p55
        $region22: #{tpu_custom_call.1} parent=15 // pred_check_branch
          %110 = sbr.rel (%p108) target = $region24
        $region23: #{tpu_custom_call.1} parent=15 // pred_region
          %p111 = scmp.lt.s32.totalorder %s9, 2
          %s112 = scalar_select %p111, %s9, 2
          %s113 = smul.addr %s112, 8
          %s114 = scalar_lea.vmem %s1, %s113
        $region24: #{tpu_custom_call.1} parent=15 // pred_fallthru
          _
      $region16: #{tpu_custom_call.1} parent=5 // pred_fallthru
        _
      %p115 = scmp.le.s32.totalorder 1, %s9
      %p116 = scmp.lt.s32.totalorder %s9, 4
      %p117 = pnand %p115, %p116
      %p118 = pneg %p117
      // Predicated region
      $region25: #{tpu_custom_call.1} parent=5 // pred_check
        _
      $region26: #{tpu_custom_call.1} parent=5 // pred_check_branch
        %120 = sbr.rel (%p117) target = $region28
      $region27: #{tpu_custom_call.1} parent=5 // pred_region
        %s121 = ssub.s32 %s9, 1
        %p122 = scmp.lt.s32.totalorder %s14, 2
        %s123 = scalar_select %p122, %s14, 2
        %s124 = smul.addr %s123, 8
        %s125 = scalar_lea.vmem %s0, %s124
        %p126 = pneg %p35
        %p127 = pneg %p32
        %p128 = scmp.lt.s32.totalorder %s14, 2
        %s129 = scalar_select %p128, %s14, 2
        %s130 = smul.addr %s129, 8
        %s131 = scalar_lea.vmem %s1, %s130
        %p132 = pneg %p61
        %p133 = pneg %p58
        %p134 = pneg %p82
        %p135 = pneg %p79
        %p136 = scmp.lt.s32.totalorder %s14, 2
        %s137 = scalar_select %p136, %s14, 2
        %s138 = smul.addr %s137, 8
        %s139 = scalar_lea.vmem %s0, %s138
        %p140 = scmp.lt.s32.totalorder %s14, 2
        %s141 = scalar_select %p140, %s14, 2
        %s142 = smul.addr %s141, 8
        %s143 = scalar_lea.vmem %s1, %s142
        %v144 = vld [vmem:[%s139] sm:$0xff]
        %v145 = vld [vmem:[%s143] sm:$0xff]
        %vm146 = vcmask 130048
        %v147 = vsel %vm146, %v144, -inf
        %148 = vmax.xlane.f32.xlu0 %v147
        %v149 = vpop.xlane.xlu0 %148
        %v150 = vsub.f32 %v144, %v149
        %v151 = vmul.f32 %v150, 1.442695
        %v152 = vpow.pop %v151
        %v153 = vsel %vm146, %v152, 0.0
        %154 = vadd.xlane.f32.xlu0 %v153
        %v155 = vpop.xlane.xlu0 %154
        %v156 = vlaneseq
        %v157 = vand.u32 %v156, 127
        %158 = vset.pattern.permute.xlu0 0
        %159 = vperm.xlu0 %158, %v145
        %v160 = vpop.permute.xlu0 %159
        %vm161 = vcmp.eq.s32.totalorder %v157, %v160
        %v162 = vsel %vm161, %v150, 0.0
        %v163 = vsel %vm146, %v162, 0.0
        %164 = vadd.xlane.f32.xlu0 %v163
        %v165 = vpop.xlane.xlu0 %164
        %v166 = vlog2.pop %v155
        %v167 = vmul.f32 %v166, 0.6931472
        %v168 = vsub.f32 %v167, %v165
        %v169 = vsub.f32 0.0, %v168
        %v170 = vmul.f32 %v169, 1.442695
        %v171 = vpow.pop %v170
        %v172 = vsub.f32 1.0, %v171
        %v173 = vmul.f32 %v172, %v172
        %v174 = vmul.f32 %v173, %v168
        %s175 = smul.u32 %s14, 8
        %v176 = vlaneseq
        %v177 = vshrl.u32 %v176, 7
        %v178 = vstv %s175
        %v179 = vadd.s32 %v178, %v177
        %vm180 = vcmp.lt.s32.totalorder %v179, 20
        %v181 = vsel %vm180, %v174, 0.0
        %vm182 = vcmask 7168
        %v183 = vsel %vm182, %v181, 0.0
        %184 = vadd.xlane.f32.xlu0 %v183
        %v185 = vpop.xlane.xlu0 %184
        %v186 = vrot.slane %v185, 4
        %v187 = vadd.f32 %v185, %v186
        %v188 = vrot.slane %v187, 2
        %v189 = vadd.f32 %v187, %v188
        %v190 = vrot.slane %v189, 1
        %v191 = vadd.f32 %v189, %v190
        %s192 = vtos %v191
        %v193 = vstv %s192
        %p194 = scmp.eq.s32.totalorder %s14, 0
        // Predicated region
        $region29: #{tpu_custom_call.1} parent=27 // pred_check
          %p195 = pneg %p194
        $region30: #{tpu_custom_call.1} parent=27 // pred_check_branch
          %197 = sbr.rel (%p195) target = $region32
        $region31: #{tpu_custom_call.1} parent=27 // pred_region
          %vm198 = vcmask 0
          %199 = vst.msk [vmem:[#allocation2] sm:$0x1] %vm198, 0.0
        $region32: #{tpu_custom_call.1} parent=27 // pred_fallthru
          _
        %v200 = vld [vmem:[#allocation2] sm:$0x1]
        %v201 = vadd.f32 %v200, %v193
        %vm202 = vcmask 0
        %203 = vst.msk [vmem:[#allocation2] sm:$0x1] %vm202, %v201
        %p204 = scmp.eq.s32.totalorder %s14, 2
        // Predicated region
        $region33: #{tpu_custom_call.1} parent=27 // pred_check
          %p205 = pneg %p204
        $region34: #{tpu_custom_call.1} parent=27 // pred_check_branch
          %207 = sbr.rel (%p205) target = $region36
        $region35: #{tpu_custom_call.1} parent=27 // pred_region
          %v208 = vld [vmem:[#allocation2] sm:$0x1]
          %v209 = vmul.f32 %v208, 0.05
          %210 = vst.msk [vmem:[#allocation2] sm:$0x1] %vm202, %v209
        $region36: #{tpu_custom_call.1} parent=27 // pred_fallthru
          _
        // Predicated region
        $region37: #{tpu_custom_call.1} parent=27 // pred_check
          %p211 = pneg %p79
        $region38: #{tpu_custom_call.1} parent=27 // pred_check_branch
          %213 = sbr.rel (%p211) target = $region40
        $region39: #{tpu_custom_call.1} parent=27 // pred_region
          %215 = vsyncadd [#allocation3], 0
          %s217 = sshll.u32 [#allocation2], 4
          %s218 = int_to_ptr.vmem [resolvable:$true] %s217
          %s219 = sshll.u32 %s2, 4
          %s220 = int_to_ptr.hbm [resolvable:$true] %s219
          %222 = dma.vmem_to_hbm [thread:$0]  %s218, 16, %s220, [#allocation3]
        $region40: #{tpu_custom_call.1} parent=27 // pred_fallthru
          _
        // Predicated region
        $region41: #{tpu_custom_call.1} parent=27 // pred_check
          %p223 = pneg %p79
        $region42: #{tpu_custom_call.1} parent=27 // pred_check_branch
          %225 = sbr.rel (%p223) target = $region44
        $region43: #{tpu_custom_call.1} parent=27 // pred_region
          %227 = dma.done [#allocation3], 16
        $region44: #{tpu_custom_call.1} parent=27 // pred_fallthru
          _
      $region28: #{tpu_custom_call.1} parent=5 // pred_fallthru
        _
      %p228 = scmp.le.s32.totalorder 2, %s9
      // Predicated region
      $region45: #{tpu_custom_call.1} parent=5 // pred_check
        %p229 = pneg %p228
      $region46: #{tpu_custom_call.1} parent=5 // pred_check_branch
        %231 = sbr.rel (%p229) target = $region48
      $region47: #{tpu_custom_call.1} parent=5 // pred_region
        %s232 = ssub.s32 %s9, 2
      $region48: #{tpu_custom_call.1} parent=5 // pred_fallthru
        _
    $region6: #{tpu_custom_call.1} parent=1 // loop_footer
      %s13 = sadd.s32 1, %s9
    $region7: #{tpu_custom_call.1} parent=1 // loop_footer_branch
      %8 = sbr.rel target = $region3
    $region8: #{tpu_custom_call.1} parent=1 // loop_exit
      _
    %233 = vsyncpa [#allocation3], 1
    %s234 = scalar_lea.sflag [#allocation3], 1
    %235 = vsyncpa %s234, 1

</llo_original>
